<compile_context>
chip_gen: v7x
topology: tpu7x:2x2x1
jax: 0.10.0
libtpu: 0.0.40
codegen_flags: <defaults>
</compile_context>

<pallas_src>
import math

import jax
import jax.numpy as jnp
from jax.experimental import pallas as pl
from jax.experimental.pallas import tpu as pltpu

NUM_CLASSES = 40
BN_EPS = 1e-5
ACT_DTYPE = jnp.bfloat16      # activations + conv weights; accumulation stays f32

# torchvision mobilenet_v2 inverted-residual config: (expand_ratio t, out_ch c, repeats n, stride s)
IR_SETTING = [
    (1, 16, 1, 1),
    (6, 24, 2, 2),
    (6, 32, 3, 2),
    (6, 64, 4, 2),
    (6, 96, 3, 1),
    (6, 160, 3, 2),
    (6, 320, 1, 1),
]


# ----------------------------- Stem matmul kernel -----------------------------

def _matmul_bias_relu6_kernel(x_ref, w_ref, b_ref, o_ref):
    acc = jnp.dot(x_ref[...], w_ref[...], preferred_element_type=jnp.float32)
    o_ref[...] = jnp.clip(acc + b_ref[...], 0.0, 6.0).astype(o_ref.dtype)


def _pick_row_tile(M, tm_max=512):
    """Largest row tile (HBM roofline) but >= 2 grid steps when M allows, so both v7x
    TensorCores get work.  Ragged last block is handled by the cdiv grid (no M padding)."""
    if M > tm_max:
        return tm_max
    half = (M + 1) // 2
    half = ((half + 15) // 16) * 16          # multiple of 16: valid sublane tiling
    return half if half < M else M


def matmul_bias_relu6(x, w, b, *, out_dtype=None, tm_max=512):
    """clip(x @ w + b, 0, 6); BN scale already folded into w."""
    M, K = x.shape
    N = w.shape[1]
    out_dtype = x.dtype if out_dtype is None else out_dtype
    tm = _pick_row_tile(M, tm_max)
    return pl.pallas_call(
        _matmul_bias_relu6_kernel,
        out_shape=jax.ShapeDtypeStruct((M, N), out_dtype),
        grid=(pl.cdiv(M, tm),),
        in_specs=[
            pl.BlockSpec((tm, K), lambda i: (i, 0)),
            pl.BlockSpec((K, N), lambda i: (0, 0)),
            pl.BlockSpec((1, N), lambda i: (0, 0)),
        ],
        out_specs=pl.BlockSpec((tm, N), lambda i: (i, 0)),
        compiler_params=pltpu.CompilerParams(dimension_semantics=("parallel",)),
    )(x, w, b.reshape(1, N).astype(jnp.float32))


# ----------------------------- Fused inverted-residual kernel -----------------------------

def _win(stride, dim, k):
    """(input_start, output_start, count) of the valid window for tap offset k in {0,1,2}
    along one spatial dim with pad=1.  Edge taps shrink instead of reading padding."""
    d = k - 1
    if stride == 1:
        return max(0, d), max(0, -d), dim - abs(d)
    # stride 2, pad 1, dim even: only d == -1 clips (the first output row/col)
    out_dim = dim // 2
    if d == -1:
        return 1, 1, out_dim - 1
    return d, 0, out_dim


def _fused_block_kernel(H, W, stride, has_expand, use_res):
    """expand 1x1 (+BN+ReLU6) -> dw 3x3 (+BN+ReLU6, pad=1, stride) -> project 1x1 (+BN)
    [+ residual], with the expanded activation resident in a VMEM scratch."""
    Ho, Wo = H // stride, W // stride

    def kernel(*refs):
        if has_expand:
            (x_ref, we_ref, be_ref, wd_ref, bd_ref, wp_ref, bp_ref,
             o_ref, h_ref, acc_ref) = refs
        else:
            (x_ref, wd_ref, bd_ref, wp_ref, bp_ref,
             o_ref, h_ref, acc_ref) = refs

        x2 = x_ref[0]                                            # (H*W, Cin) bf16

        # ---- expand 1x1 conv (BN scale folded into weight columns) ----
        if has_expand:
            ex = jnp.dot(x2, we_ref[...], preferred_element_type=jnp.float32)
            ex = jnp.clip(ex + be_ref[...], 0.0, 6.0).astype(ACT_DTYPE)
        else:
            ex = x2
        h_ref[...] = ex.reshape(H, W, -1)                        # stays in VMEM

        # ---- 3x3 depthwise, pad=1, stride in {1,2}; halo handled via valid sub-windows ----
        def tap_read(ir, nr, ic, nc):
            if stride == 1:
                return h_ref[ir:ir + nr, ic:ic + nc, :]
            return h_ref[pl.ds(ir, nr, 2), pl.ds(ic, nc, 2), :]

        # centre tap is always a full window -> use it to initialise the accumulator
        ir, _, nr = _win(stride, H, 1)
        ic, _, nc = _win(stride, W, 1)
        acc_ref[...] = tap_read(ir, nr, ic, nc).astype(jnp.float32) * wd_ref[4, :]
        for ky in range(3):
            ir, orow, nr = _win(stride, H, ky)
            if nr <= 0:
                continue
            for kx in range(3):
                if ky == 1 and kx == 1:
                    continue
                ic, ocol, nc = _win(stride, W, kx)
                if nc <= 0:
                    continue
                acc_ref[orow:orow + nr, ocol:ocol + nc, :] += (
                    tap_read(ir, nr, ic, nc).astype(jnp.float32) * wd_ref[ky * 3 + kx, :])

        d = jnp.clip(acc_ref[...] + bd_ref[...], 0.0, 6.0).astype(ACT_DTYPE)

        # ---- project 1x1 conv (+ folded BN), optional residual ----
        y = jnp.dot(d.reshape(Ho * Wo, -1), wp_ref[...],
                    preferred_element_type=jnp.float32) + bp_ref[...]
        if use_res:
            y = y + x2.astype(jnp.float32)
        o_ref[0] = y.astype(o_ref.dtype)

    return kernel


def fused_inverted_residual(x, blk, H, W):
    """x: (N, H*W, Cin) bf16.  Returns ((N, Ho*Wo, Cout), Ho, Wo)."""
    N, HW, Cin = x.shape
    assert HW == H * W
    stride = blk["stride"]
    assert H % stride == 0 and W % stride == 0
    Ho, Wo = H // stride, W // stride
    has_expand = "we" in blk
    hid = blk["wd"].shape[1]
    Cout = blk["wp"].shape[1]

    args = [x]
    in_specs = [pl.BlockSpec((1, HW, Cin), lambda n: (n, 0, 0))]
    if has_expand:
        args += [blk["we"], blk["be"]]
        in_specs += [pl.BlockSpec((Cin, hid), lambda n: (0, 0)),
                     pl.BlockSpec((1, hid), lambda n: (0, 0))]
    args += [blk["wd"], blk["bd"], blk["wp"], blk["bp"]]
    in_specs += [pl.BlockSpec((9, hid), lambda n: (0, 0)),
                 pl.BlockSpec((1, hid), lambda n: (0, 0)),
                 pl.BlockSpec((hid, Cout), lambda n: (0, 0)),
                 pl.BlockSpec((1, Cout), lambda n: (0, 0))]

    out = pl.pallas_call(
        _fused_block_kernel(H, W, stride, has_expand, blk["use_res"]),
        out_shape=jax.ShapeDtypeStruct((N, Ho * Wo, Cout), x.dtype),
        grid=(N,),
        in_specs=in_specs,
        out_specs=pl.BlockSpec((1, Ho * Wo, Cout), lambda n: (n, 0, 0)),
        scratch_shapes=[pltpu.VMEM((H, W, hid), ACT_DTYPE),        # expanded activation
                        pltpu.VMEM((Ho, Wo, hid), jnp.float32)],   # dw accumulator
        compiler_params=pltpu.CompilerParams(dimension_semantics=("parallel",)),
    )(*args)
    return out, Ho, Wo


# ----------------------------- Fused head kernel -----------------------------

def _head_kernel(x_ref, wl_ref, bl_ref, wc_ref, bc_ref, o_ref):
    h = jnp.dot(x_ref[0], wl_ref[...], preferred_element_type=jnp.float32)   # (HW, 1280)
    h = jnp.clip(h + bl_ref[...], 0.0, 6.0)
    pooled = jnp.mean(h, axis=0, keepdims=True)                              # global avg pool
    logits = jnp.dot(pooled, wc_ref[...], preferred_element_type=jnp.float32) + bc_ref[...]
    o_ref[0] = logits.astype(o_ref.dtype)


def fused_head(x, wl, bl, wc, bc):
    """last 1x1 conv (+BN+ReLU6) + global average pool + Linear classifier, per image."""
    N, HW, C = x.shape
    F = wl.shape[1]
    ncls = wc.shape[1]
    out = pl.pallas_call(
        _head_kernel,
        out_shape=jax.ShapeDtypeStruct((N, 1, ncls), jnp.float32),
        grid=(N,),
        in_specs=[
            pl.BlockSpec((1, HW, C), lambda n: (n, 0, 0)),
            pl.BlockSpec((C, F), lambda n: (0, 0)),
            pl.BlockSpec((1, F), lambda n: (0, 0)),
            pl.BlockSpec((F, ncls), lambda n: (0, 0)),
            pl.BlockSpec((1, ncls), lambda n: (0, 0)),
        ],
        out_specs=pl.BlockSpec((1, 1, ncls), lambda n: (n, 0, 0)),
        compiler_params=pltpu.CompilerParams(dimension_semantics=("parallel",)),
    )(x, wl, bl, wc, bc)
    return out.reshape(N, ncls)


# ----------------------------- Network glue -----------------------------

def stem_conv(x_nhwc, p):
    """3x3 stride-2 conv + BN + ReLU6.  Cin=3 / K=27 -> im2col in XLA, fused matmul kernel.
    TODO(synk): fold the 9-tap patch gather into the matmul kernel to save one HBM pass."""
    N, H, W, Cin = x_nhwc.shape
    stride = 2
    Ho = (H + 2 - 3) // stride + 1
    Wo = (W + 2 - 3) // stride + 1
    xp = jnp.pad(x_nhwc, ((0, 0), (1, 1), (1, 1), (0, 0)))
    cols = []
    for ky in range(3):
        for kx in range(3):
            cols.append(xp[:, ky:ky + stride * (Ho - 1) + 1:stride,
                           kx:kx + stride * (Wo - 1) + 1:stride, :])
    # column order (ky, kx, cin) must match the synthetic (27, 32) weight rows.
    patches = jnp.concatenate(cols, axis=-1).reshape(N * Ho * Wo, 9 * Cin)
    y = matmul_bias_relu6(patches, p["w"], p["b"])
    return y.reshape(N, Ho * Wo, -1), Ho, Wo


def mobilenet_v2_forward(x_nchw, params):
    x = jnp.transpose(x_nchw, (0, 2, 3, 1)).astype(ACT_DTYPE)     # NCHW -> NHWC, bf16
    x, H, W = stem_conv(x, params["stem"])
    for blk in params["blocks"]:
        x, H, W = fused_inverted_residual(x, blk, H, W)
    # Classifier Dropout(p=0.2) is identity under inference semantics.
    return fused_head(x, params["last_w"], params["last_b"],
                      params["cls_w"], params["cls_b"])


# ----------------------------- Parameter init -----------------------------
# Deterministic synthetic weights (the pretrained ImageNet checkpoint cannot be loaded here).

class _KeyGen:
    def __init__(self, seed):
        self._key = jax.random.PRNGKey(seed)

    def __call__(self):
        self._key, sub = jax.random.split(self._key)
        return sub


def _bn_fold(kg, c):
    gamma = 1.0 + 0.1 * jax.random.normal(kg(), (c,), jnp.float32)
    beta = 0.05 * jax.random.normal(kg(), (c,), jnp.float32)
    mean = 0.05 * jax.random.normal(kg(), (c,), jnp.float32)
    var = 1.0 + 0.1 * jnp.abs(jax.random.normal(kg(), (c,), jnp.float32))
    scale = gamma / jnp.sqrt(var + BN_EPS)
    bias = beta - mean * scale
    return scale, bias


def init_params(seed=0, num_classes=NUM_CLASSES):
    kg = _KeyGen(seed)

    def conv_bn(cin_eff, cout):
        w = jax.random.normal(kg(), (cin_eff, cout), jnp.float32) * math.sqrt(2.0 / cin_eff)
        s, b = _bn_fold(kg, cout)
        return (w * s[None, :]).astype(ACT_DTYPE), b.reshape(1, cout)   # BN scale folded

    stem_w, stem_b = conv_bn(9 * 3, 32)
    params = {"stem": dict(w=stem_w, b=stem_b)}

    blocks = []
    in_c = 32
    for t, c, n, s in IR_SETTING:
        for i in range(n):
            stride = s if i == 0 else 1
            hidden = in_c * t
            blk = dict(stride=stride, use_res=(stride == 1 and in_c == c))
            if t != 1:
                blk["we"], blk["be"] = conv_bn(in_c, hidden)
            dw_w = jax.random.normal(kg(), (9, hidden), jnp.float32) * math.sqrt(2.0 / 9.0)
            dw_s, dw_b = _bn_fold(kg, hidden)
            blk["wd"] = dw_w * dw_s[None, :]                 # BN scale folded into taps (f32)
            blk["bd"] = dw_b.reshape(1, hidden)
            blk["wp"], blk["bp"] = conv_bn(hidden, c)
            blocks.append(blk)
            in_c = c
    params["blocks"] = blocks

    params["last_w"], params["last_b"] = conv_bn(in_c, 1280)
    params["cls_w"] = (jax.random.normal(kg(), (1280, num_classes), jnp.float32)
                       * math.sqrt(1.0 / 1280))              # classifier kept f32 (tiny)
    params["cls_b"] = jnp.zeros((1, num_classes), jnp.float32)
    return params


# ----------------------------- Main -----------------------------

if __name__ == "__main__":
    key = jax.random.PRNGKey(0)
    # Small but architecture-consistent input: 32x32 survives the 5 stride-2 stages.
    x = jax.random.normal(key, (2, 3, 32, 32), jnp.float32)   # NCHW like PyTorch
    params = init_params(seed=0)
    logits = mobilenet_v2_forward(x, params)
    logits = jax.block_until_ready(logits)
    assert logits.shape == (2, NUM_CLASSES), logits.shape
    assert bool(jnp.all(jnp.isfinite(logits)))
    print("KERNEL_OK")
</pallas_src>

<mosaic_0001>
module attributes {stable_mosaic.version = 11 : i64} {
  func.func @_matmul_bias_relu6_kernel(%arg0: i32, %arg1: memref<256x27xbf16, #tpu.memory_space<vmem>>, %arg2: memref<27x32xbf16, #tpu.memory_space<vmem>>, %arg3: memref<1x32xf32, #tpu.memory_space<vmem>>, %arg4: memref<256x32xbf16, #tpu.memory_space<vmem>>) attributes {dimension_semantics = [#tpu.dimension_semantics<parallel>], iteration_bounds = array<i64: 2>, scalar_prefetch = 0 : i64, scratch_operands = 0 : i64, tpu.core_type = #tpu.core_type<tc>, window_params = [{transform_indices = @transform_0, window_bounds = array<i64: 256, 27>}, {pipeline_mode = #tpu.pipeline_mode<synchronous>, transform_indices = @transform_1, window_bounds = array<i64: 27, 32>}, {pipeline_mode = #tpu.pipeline_mode<synchronous>, transform_indices = @transform_2, window_bounds = array<i64: 1, 32>}, {transform_indices = @transform_3, window_bounds = array<i64: 256, 32>}]} {
    %c0 = arith.constant 0 : index
    %c0_0 = arith.constant 0 : index
    %0 = vector.load %arg1[%c0, %c0_0] : memref<256x27xbf16, #tpu.memory_space<vmem>>, vector<256x27xbf16>
    %c0_1 = arith.constant 0 : index
    %c0_2 = arith.constant 0 : index
    %1 = vector.load %arg2[%c0_1, %c0_2] : memref<27x32xbf16, #tpu.memory_space<vmem>>, vector<27x32xbf16>
    %cst = arith.constant dense<0.000000e+00> : vector<256x32xf32>
    %2 = tpu.matmul %0, %1, %cst {dimension_numbers = #tpu.dot_dimension_numbers<[1], [0], [0], [1], [0, 0, 1, 1], [], []>} : vector<256x27xbf16>, vector<27x32xbf16>, vector<256x32xf32> -> vector<256x32xf32>
    %c0_3 = arith.constant 0 : index
    %c0_4 = arith.constant 0 : index
    %3 = vector.load %arg3[%c0_3, %c0_4] : memref<1x32xf32, #tpu.memory_space<vmem>>, vector<1x32xf32>
    %4 = vector.broadcast %3 : vector<1x32xf32> to vector<256x32xf32>
    %5 = arith.addf %2, %4 : vector<256x32xf32>
    %cst_5 = arith.constant 0.000000e+00 : f32
    %cst_6 = arith.constant 6.000000e+00 : f32
    %6 = vector.broadcast %cst_5 : f32 to vector<256x32xf32>
    %7 = arith.maximumf %6, %5 : vector<256x32xf32>
    %8 = vector.broadcast %cst_6 : f32 to vector<256x32xf32>
    %9 = arith.minimumf %8, %7 : vector<256x32xf32>
    %10 = arith.truncf %9 : vector<256x32xf32> to vector<256x32xbf16>
    %c0_7 = arith.constant 0 : index
    %c0_8 = arith.constant 0 : index
    %11 = vector.load %arg4[%c0_7, %c0_8] : memref<256x32xbf16, #tpu.memory_space<vmem>>, vector<256x32xbf16>
    tpu.vector_store %arg4[%c0_7, %c0_8], %10 {strides = array<i32>} : memref<256x32xbf16, #tpu.memory_space<vmem>>, vector<256x32xbf16>,
    return
  }
  func.func @transform_0(%arg0: i32) -> (i32, i32) {
    %c0_i32 = arith.constant 0 : i32
    %c0_i32_0 = arith.constant 0 : i32
    return %arg0, %c0_i32 : i32, i32
  }
  func.func @transform_1(%arg0: i32) -> (i32, i32) {
    %c0_i32 = arith.constant 0 : i32
    %c0_i32_0 = arith.constant 0 : i32
    %c0_i32_1 = arith.constant 0 : i32
    return %c0_i32, %c0_i32_0 : i32, i32
  }
  func.func @transform_2(%arg0: i32) -> (i32, i32) {
    %c0_i32 = arith.constant 0 : i32
    %c0_i32_0 = arith.constant 0 : i32
    %c0_i32_1 = arith.constant 0 : i32
    return %c0_i32, %c0_i32_0 : i32, i32
  }
  func.func @transform_3(%arg0: i32) -> (i32, i32) {
    %c0_i32 = arith.constant 0 : i32
    %c0_i32_0 = arith.constant 0 : i32
    return %arg0, %c0_i32 : i32, i32
  }
}

</mosaic_0001>

<llo_original>
// kernel: tpu_custom_call.1
$region0: #{tpu_custom_call.1}
  #allocation0 [shape = 'u32[]', space=smem, size = 0x4, offset = 0x4, fixed_abs, tag = 'smem constant byte address 0x4 - core index']
  #allocation1 [shape = 'u32[144,128]{1,0:T(1,128)}', space=vmem, size = 0x12000, scoped, tag = 'internal scratch']
  %s0 = inlined_call_operand.vmem [shape: bf16[512,27], index: 0, kind: input, shape index: {}]
  %s1 = inlined_call_operand.vmem [shape: bf16[27,32], index: 1, kind: input, shape index: {}]
  %s2 = inlined_call_operand.vmem [shape: f32[1,32], index: 2, kind: input, shape index: {}]
  %s3 = inlined_call_operand.vmem [shape: bf16[512,32], index: 3, kind: output, shape index: {}]
  %s4 = sld [smem:[#allocation0]]
  $region45: #{tpu_custom_call.1} parent=0
    _
  %s6 = ssub.s32 1, %s4
  %s7 = scalar_select 0, %s6, %s4
  loop: start=0, step=1, limit=4
  $region2: #{tpu_custom_call.1} parent=0 // loop_pre_header
    _
  $region3: #{tpu_custom_call.1} parent=0 // loop_header
    %s9 = sphi 0, %s13
    %p10 = scmp.ge.s32.totalorder %s9, 4
    %s19 = sphi 0, %s21
    %s22 = sphi 0, %s19
    %s23 = sphi 0, %s22
    %s39 = sphi 0, %s23
    %s43 = sphi 0, %s43
    %s45 = sphi 0, %s43
    %s46 = sphi 0, %s45
    %s60 = sphi 0, %s46
    %s64 = sphi 0, %s64
    %s66 = sphi 0, %s64
    %s67 = sphi 0, %s66
    %s81 = sphi 0, %s67
    %s87 = sphi 0, %s89
    %s90 = sphi 0, %s87
    %s91 = sphi 0, %s90
    %s107 = sphi 0, %s91
  $region4: #{tpu_custom_call.1} parent=0 // loop_header_branch
    %12 = sbr.rel (%p10) target = $region8
  $region5: #{tpu_custom_call.1} parent=0 // loop_body
    %s14 = ssub.s32 %s9, 1
    %s15 = ssub.s32 %s9, 2
    %s16 = sadd.s32 %s9, 1
    %s17 = ssub.s32 %s9, %s16
    %p18 = scmp.eq.s32.totalorder %s17, 0
    %s20 = sadd.s32 %s19, 1
    %s21 = scalar_select %p18, %s19, %s20
    %p24 = pneg %p18
    %p25 = scmp.eq.s32.totalorder %s9, 1
    %p26 = por %p24, %p25
    %p27 = scmp.ne.s32.totalorder %s19, %s22
    %p28 = scmp.eq.s32.totalorder %s9, 0
    %p29 = por %p27, %p28
    %p30 = scmp.ne.s32.totalorder %s19, %s22
    %p31 = scmp.eq.s32.totalorder %s14, 1
    %p32 = por %p30, %p31
    %p33 = scmp.ne.s32.totalorder %s22, %s23
    %p34 = scmp.eq.s32.totalorder %s14, 0
    %p35 = por %p33, %p34
    %p36 = scmp.ne.s32.totalorder %s22, %s23
    %p37 = scmp.eq.s32.totalorder %s15, 1
    %p38 = por %p36, %p37
    %p40 = scmp.ne.s32.totalorder %s23, %s39
    %p41 = scmp.eq.s32.totalorder %s15, 0
    %p42 = por %p40, %p41
    %s44 = sadd.s32 %s43, 1
    %p47 = scmp.eq.s32.totalorder %s9, 1
    %p48 = scmp.ne.s32.totalorder %s43, %s45
    %p49 = scmp.eq.s32.totalorder %s9, 0
    %p50 = por %p48, %p49
    %p51 = scmp.ne.s32.totalorder %s43, %s45
    %p52 = scmp.eq.s32.totalorder %s14, 1
    %p53 = por %p51, %p52
    %p54 = scmp.ne.s32.totalorder %s45, %s46
    %p55 = scmp.eq.s32.totalorder %s14, 0
    %p56 = por %p54, %p55
    %p57 = scmp.ne.s32.totalorder %s45, %s46
    %p58 = scmp.eq.s32.totalorder %s15, 1
    %p59 = por %p57, %p58
    %p61 = scmp.ne.s32.totalorder %s46, %s60
    %p62 = scmp.eq.s32.totalorder %s15, 0
    %p63 = por %p61, %p62
    %s65 = sadd.s32 %s64, 1
    %p68 = scmp.eq.s32.totalorder %s9, 1
    %p69 = scmp.ne.s32.totalorder %s64, %s66
    %p70 = scmp.eq.s32.totalorder %s9, 0
    %p71 = por %p69, %p70
    %p72 = scmp.ne.s32.totalorder %s64, %s66
    %p73 = scmp.eq.s32.totalorder %s14, 1
    %p74 = por %p72, %p73
    %p75 = scmp.ne.s32.totalorder %s66, %s67
    %p76 = scmp.eq.s32.totalorder %s14, 0
    %p77 = por %p75, %p76
    %p78 = scmp.ne.s32.totalorder %s66, %s67
    %p79 = scmp.eq.s32.totalorder %s15, 1
    %p80 = por %p78, %p79
    %p82 = scmp.ne.s32.totalorder %s67, %s81
    %p83 = scmp.eq.s32.totalorder %s15, 0
    %p84 = por %p82, %p83
    %s85 = ssub.s32 %s9, %s16
    %p86 = scmp.eq.s32.totalorder %s85, 0
    %s88 = sadd.s32 %s87, 1
    %s89 = scalar_select %p86, %s87, %s88
    %p92 = pneg %p86
    %p93 = scmp.eq.s32.totalorder %s9, 1
    %p94 = por %p92, %p93
    %p95 = scmp.ne.s32.totalorder %s87, %s90
    %p96 = scmp.eq.s32.totalorder %s9, 0
    %p97 = por %p95, %p96
    %p98 = scmp.ne.s32.totalorder %s87, %s90
    %p99 = scmp.eq.s32.totalorder %s14, 1
    %p100 = por %p98, %p99
    %p101 = scmp.ne.s32.totalorder %s90, %s91
    %p102 = scmp.eq.s32.totalorder %s14, 0
    %p103 = por %p101, %p102
    %p104 = scmp.ne.s32.totalorder %s90, %s91
    %p105 = scmp.eq.s32.totalorder %s15, 1
    %p106 = por %p104, %p105
    %p108 = scmp.ne.s32.totalorder %s91, %s107
    %p109 = scmp.eq.s32.totalorder %s15, 0
    %p110 = por %p108, %p109
    %p111 = scmp.le.s32.totalorder 1, %s9
    %p112 = scmp.lt.s32.totalorder %s9, 3
    %p113 = pnand %p111, %p112
    %p114 = pneg %p113
    // Predicated region
    $region9: #{tpu_custom_call.1} parent=5 // pred_check
      _
    $region10: #{tpu_custom_call.1} parent=5 // pred_check_branch
      %116 = sbr.rel (%p113) target = $region12
    $region11: #{tpu_custom_call.1} parent=5 // pred_region
      %s117 = ssub.s32 %s9, 1
      // Predicated region
      $region13: #{tpu_custom_call.1} parent=11 // pred_check
        %p118 = pneg %p56
      $region14: #{tpu_custom_call.1} parent=11 // pred_check_branch
        %120 = sbr.rel (%p118) target = $region16
      $region15: #{tpu_custom_call.1} parent=11 // pred_region
        _
      $region16: #{tpu_custom_call.1} parent=11 // pred_fallthru
        _
      // Predicated region
      $region17: #{tpu_custom_call.1} parent=11 // pred_check
        %p121 = pneg %p77
      $region18: #{tpu_custom_call.1} parent=11 // pred_check_branch
        %123 = sbr.rel (%p121) target = $region20
      $region19: #{tpu_custom_call.1} parent=11 // pred_region
        _
      $region20: #{tpu_custom_call.1} parent=11 // pred_fallthru
        _
    $region12: #{tpu_custom_call.1} parent=5 // pred_fallthru
      _
    %p124 = scmp.lt.s32.totalorder %s9, 2
    // Predicated region
    $region21: #{tpu_custom_call.1} parent=5 // pred_check
      %p125 = pneg %p124
    $region22: #{tpu_custom_call.1} parent=5 // pred_check_branch
      %127 = sbr.rel (%p125) target = $region24
    $region23: #{tpu_custom_call.1} parent=5 // pred_region
      // Predicated region
      $region25: #{tpu_custom_call.1} parent=23 // pred_check
        %p128 = pneg %p29
      $region26: #{tpu_custom_call.1} parent=23 // pred_check_branch
        %130 = sbr.rel (%p128) target = $region28
      $region27: #{tpu_custom_call.1} parent=23 // pred_region
        %s131 = smul.u32 32, %s9
        %p132 = scmp.lt.s32.totalorder %s131, 63
        %s133 = scalar_select %p132, %s131, 63
        %s134 = smul.addr %s133, 4
        %s135 = scalar_lea.vmem %s0, %s134
        %s136 = smul.u32 32, %s9
      $region28: #{tpu_custom_call.1} parent=23 // pred_fallthru
        _
    $region24: #{tpu_custom_call.1} parent=5 // pred_fallthru
      _
    %p137 = scmp.le.s32.totalorder 1, %s9
    %p138 = scmp.lt.s32.totalorder %s9, 3
    %p139 = pnand %p137, %p138
    %p140 = pneg %p139
    // Predicated region
    $region29: #{tpu_custom_call.1} parent=5 // pred_check
      _
    $region30: #{tpu_custom_call.1} parent=5 // pred_check_branch
      %142 = sbr.rel (%p139) target = $region32
    $region31: #{tpu_custom_call.1} parent=5 // pred_region
      %s143 = ssub.s32 %s9, 1
      %s144 = smul.u32 32, %s14
      %p145 = scmp.lt.s32.totalorder %s144, 63
      %s146 = scalar_select %p145, %s144, 63
      %s147 = smul.addr %s146, 4
      %s148 = scalar_lea.vmem %s0, %s147
      %p149 = pneg %p35
      %p150 = pneg %p32
      %p151 = pneg %p56
      %p152 = pneg %p53
      %p153 = pneg %p77
      %p154 = pneg %p74
      %p155 = pneg %p103
      %p156 = pneg %p100
      %s157 = smul.u32 32, %s14
      %p158 = scmp.lt.s32.totalorder %s157, 63
      %s159 = scalar_select %p158, %s157, 63
      %s160 = smul.addr %s159, 4
      %s161 = scalar_lea.vmem %s3, %s160
      %s162 = smul.u32 32, %s14
      %p163 = scmp.lt.s32.totalorder %s162, 63
      %s164 = scalar_select %p163, %s162, 63
      %s165 = smul.addr %s164, 4
      %s166 = scalar_lea.vmem %s0, %s165
      %s167 = smul.u32 32, %s14
      %s168 = smul.u32 32, %s14
      %p169 = scmp.lt.s32.totalorder %s168, 63
      %s170 = scalar_select %p169, %s168, 63
      %s171 = smul.addr %s170, 4
      %s172 = scalar_lea.vmem %s3, %s171
      %s173 = smul.u32 32, %s14
      %v175 = vld [vmem:[%s166] sm:$0xf]
      %v176 = vld [vmem:[%s166 + $0x4] sm:$0xf]
      %v177 = vld [vmem:[%s166 + $0x8] sm:$0xf]
      %v178 = vld [vmem:[%s166 + $0xc] sm:$0xf]
      %v179 = vld [vmem:[%s166 + $0x10] sm:$0xf]
      %v180 = vld [vmem:[%s166 + $0x14] sm:$0xf]
      %v181 = vld [vmem:[%s166 + $0x18] sm:$0xf]
      %v182 = vld [vmem:[%s166 + $0x1c] sm:$0xf]
      %v183 = vld [vmem:[%s166 + $0x20] sm:$0xf]
      %v184 = vld [vmem:[%s166 + $0x24] sm:$0xf]
      %v185 = vld [vmem:[%s166 + $0x28] sm:$0xf]
      %v186 = vld [vmem:[%s166 + $0x2c] sm:$0xf]
      %v187 = vld [vmem:[%s166 + $0x30] sm:$0xf]
      %v188 = vld [vmem:[%s166 + $0x34] sm:$0xf]
      %v189 = vld [vmem:[%s166 + $0x38] sm:$0xf]
      %v190 = vld [vmem:[%s166 + $0x3c] sm:$0xf]
      %v191 = vld [vmem:[%s166 + $0x40] sm:$0xf]
      %v192 = vld [vmem:[%s166 + $0x44] sm:$0xf]
      %v193 = vld [vmem:[%s166 + $0x48] sm:$0xf]
      %v194 = vld [vmem:[%s166 + $0x4c] sm:$0xf]
      %v195 = vld [vmem:[%s166 + $0x50] sm:$0xf]
      %v196 = vld [vmem:[%s166 + $0x54] sm:$0xf]
      %v197 = vld [vmem:[%s166 + $0x58] sm:$0xf]
      %v198 = vld [vmem:[%s166 + $0x5c] sm:$0xf]
      %v199 = vld [vmem:[%s166 + $0x60] sm:$0xf]
      %v200 = vld [vmem:[%s166 + $0x64] sm:$0xf]
      %v201 = vld [vmem:[%s166 + $0x68] sm:$0xf]
      %v202 = vld [vmem:[%s166 + $0x6c] sm:$0xf]
      %v203 = vld [vmem:[%s166 + $0x70] sm:$0xf]
      %v204 = vld [vmem:[%s166 + $0x74] sm:$0xf]
      %v205 = vld [vmem:[%s166 + $0x78] sm:$0xf]
      %v206 = vld [vmem:[%s166 + $0x7c] sm:$0xf]
      %v207 = vld [vmem:[%s1] sm:$0xf]
      %v208 = vld [vmem:[%s1 + $0x4] sm:$0xf]
      %v209 = vld [vmem:[%s1 + $0x8] sm:$0xf]
      %v210 = vld [vmem:[%s1 + $0xc] sm:$0x3]
      %v211 = vld [vmem:[%s2] sm:$0x1]
      %v213 = vlaneseq
      %v214 = vshrl.u32 %v213, 7
      %v215 = vsub.s32 0, %v214
      %v216 = vrot.slane %v211, %v215
      %v250 = vunpack.c.l.b16 %v175
      %v251 = vunpack.c.l.b16 %v176
      %v252 = vunpack.c.l.b16 %v177
      %v253 = vunpack.c.l.b16 %v178
      %v254 = vunpack.c.l.b16 %v179
      %v255 = vunpack.c.l.b16 %v180
      %v256 = vunpack.c.l.b16 %v181
      %v257 = vunpack.c.l.b16 %v182
      %v258 = vunpack.c.l.b16 %v183
      %v259 = vunpack.c.l.b16 %v184
      %v260 = vunpack.c.l.b16 %v185
      %v261 = vunpack.c.l.b16 %v186
      %v262 = vunpack.c.l.b16 %v187
      %v263 = vunpack.c.l.b16 %v188
      %v264 = vunpack.c.l.b16 %v189
      %v265 = vunpack.c.l.b16 %v190
      %v266 = vunpack.c.l.b16 %v191
      %v267 = vunpack.c.l.b16 %v192
      %v268 = vunpack.c.l.b16 %v193
      %v269 = vunpack.c.l.b16 %v194
      %v270 = vunpack.c.l.b16 %v195
      %v271 = vunpack.c.l.b16 %v196
      %v272 = vunpack.c.l.b16 %v197
      %v273 = vunpack.c.l.b16 %v198
      %v274 = vunpack.c.l.b16 %v199
      %v275 = vunpack.c.l.b16 %v200
      %v276 = vunpack.c.l.b16 %v201
      %v277 = vunpack.c.l.b16 %v202
      %v278 = vunpack.c.l.b16 %v203
      %v279 = vunpack.c.l.b16 %v204
      %v280 = vunpack.c.l.b16 %v205
      %v281 = vunpack.c.l.b16 %v206
      %v282 = vpack.c.b16 %v251, %v250
      %v283 = vpack.c.b16 %v253, %v252
      %v284 = vpack.c.b16 %v255, %v254
      %v285 = vpack.c.b16 %v257, %v256
      %v286 = vpack.c.b16 %v259, %v258
      %v287 = vpack.c.b16 %v261, %v260
      %v288 = vpack.c.b16 %v263, %v262
      %v289 = vpack.c.b16 %v265, %v264
      %v290 = vpack.c.b16 %v267, %v266
      %v291 = vpack.c.b16 %v269, %v268
      %v292 = vpack.c.b16 %v271, %v270
      %v293 = vpack.c.b16 %v273, %v272
      %v294 = vpack.c.b16 %v275, %v274
      %v295 = vpack.c.b16 %v277, %v276
      %v296 = vpack.c.b16 %v279, %v278
      %v297 = vpack.c.b16 %v281, %v280
      %v302 = vunpack.c.l.b16 %v207
      %v303 = vunpack.c.l.b16 %v208
      %v304 = vunpack.c.l.b16 %v209
      %v305 = vunpack.c.l.b16 %v210
      %v306 = vpack.c.b16 %v303, %v302
      %v307 = vpack.c.b16 %v305, %v304
      %vm309 = vcmask 220160
      %v311 = vsel %vm309, %v282, 0
      %v314 = vsel %vm309, %v283, 0
      %v317 = vsel %vm309, %v284, 0
      %v320 = vsel %vm309, %v285, 0
      %v323 = vsel %vm309, %v286, 0
      %v326 = vsel %vm309, %v287, 0
      %v329 = vsel %vm309, %v288, 0
      %v332 = vsel %vm309, %v289, 0
      %v335 = vsel %vm309, %v290, 0
      %v338 = vsel %vm309, %v291, 0
      %v341 = vsel %vm309, %v292, 0
      %v344 = vsel %vm309, %v293, 0
      %v347 = vsel %vm309, %v294, 0
      %v350 = vsel %vm309, %v295, 0
      %v353 = vsel %vm309, %v296, 0
      %v356 = vsel %vm309, %v297, 0
      %vm358 = vcmask 1044480
      %vm359 = vcmask 1045504
      %v360 = vsel %vm358, 4294967295, 65535
      %v361 = vsel %vm359, %v360, 0
      %v363 = vand.u32 %v307, %v361
      %365 = vmatprep.subr.bf16.mxu0 0
      %366 = vmatpush1.bf16.msra.mxu0 %v306
      %367 = vmatprep.subr.bf16.mxu0 0
      %368 = vmatpush1.bf16.msra.mxu0 %v363
      %369 = vmatprep.subr.bf16.mxu0 0
      %370 = vmatpush1.bf16.msra.mxu0 0
      %371 = vmatprep.subr.bf16.mxu0 0
      %372 = vmatpush1.bf16.msra.mxu0 0
      %373 = vmatprep.subr.bf16.mxu0 0
      %374 = vmatpush1.bf16.msra.mxu0 0
      %375 = vmatprep.subr.bf16.mxu0 0
      %376 = vmatpush1.bf16.msra.mxu0 0
      %377 = vmatprep.subr.bf16.mxu0 0
      %378 = vmatpush1.bf16.msra.mxu0 0
      %379 = vmatprep.subr.bf16.mxu0 0
      %380 = vmatpush1.bf16.msra.mxu0 0
      %381 = vmatprep.subr.bf16.mxu0 0
      %382 = vmatpush1.bf16.msra.mxu0 0
      %383 = vmatprep.subr.bf16.mxu0 0
      %384 = vmatpush1.bf16.msra.mxu0 0
      %385 = vmatprep.subr.bf16.mxu0 0
      %386 = vmatpush1.bf16.msra.mxu0 0
      %387 = vmatprep.subr.bf16.mxu0 0
      %388 = vmatpush1.bf16.msra.mxu0 0
      %389 = vmatprep.subr.bf16.mxu0 0
      %390 = vmatpush1.bf16.msra.mxu0 0
      %391 = vmatprep.subr.bf16.mxu0 0
      %392 = vmatpush1.bf16.msra.mxu0 0
      %393 = vmatprep.subr.bf16.mxu0 0
      %394 = vmatpush1.bf16.msra.mxu0 0
      %395 = vmatprep.subr.bf16.mxu0 0
      %396 = vmatpush1.bf16.msra.mxu0 0
      %397 = vmatprep.mubr.bf16.mxu0 0
      %398 = vmatmul.mubr.bf16.gmra.mrb[0].mxu0 %v311
      %v399 = vpop.f32.mrb[0].mxu0
      %v400 = vadd.f32 %v216, %v399
      %v401 = vpop.f32.mrb[0].mxu0
      %v402 = vpop.f32.mrb[0].mxu0
      %v403 = vadd.f32 %v216, %v402
      %v404 = vpop.f32.mrb[0].mxu0
      %405 = vmatprep.mubr.bf16.mxu0 0
      %406 = vmatmul.mubr.bf16.gmra.mrb[0].mxu0 %v314
      %v407 = vpop.f32.mrb[0].mxu0
      %v408 = vadd.f32 %v216, %v407
      %v409 = vpop.f32.mrb[0].mxu0
      %v410 = vpop.f32.mrb[0].mxu0
      %v411 = vadd.f32 %v216, %v410
      %v412 = vpop.f32.mrb[0].mxu0
      %413 = vmatprep.mubr.bf16.mxu0 0
      %414 = vmatmul.mubr.bf16.gmra.mrb[0].mxu0 %v317
      %v415 = vpop.f32.mrb[0].mxu0
      %v416 = vadd.f32 %v216, %v415
      %v417 = vpop.f32.mrb[0].mxu0
      %v418 = vpop.f32.mrb[0].mxu0
      %v419 = vadd.f32 %v216, %v418
      %v420 = vpop.f32.mrb[0].mxu0
      %421 = vmatprep.mubr.bf16.mxu0 0
      %422 = vmatmul.mubr.bf16.gmra.mrb[0].mxu0 %v320
      %v423 = vpop.f32.mrb[0].mxu0
      %v424 = vadd.f32 %v216, %v423
      %v425 = vpop.f32.mrb[0].mxu0
      %v426 = vpop.f32.mrb[0].mxu0
      %v427 = vadd.f32 %v216, %v426
      %v428 = vpop.f32.mrb[0].mxu0
      %429 = vmatprep.mubr.bf16.mxu0 0
      %430 = vmatmul.mubr.bf16.gmra.mrb[0].mxu0 %v323
      %v431 = vpop.f32.mrb[0].mxu0
      %v432 = vadd.f32 %v216, %v431
      %v433 = vpop.f32.mrb[0].mxu0
      %v434 = vpop.f32.mrb[0].mxu0
      %v435 = vadd.f32 %v216, %v434
      %v436 = vpop.f32.mrb[0].mxu0
      %437 = vmatprep.mubr.bf16.mxu0 0
      %438 = vmatmul.mubr.bf16.gmra.mrb[0].mxu0 %v326
      %v439 = vpop.f32.mrb[0].mxu0
      %v440 = vadd.f32 %v216, %v439
      %v441 = vpop.f32.mrb[0].mxu0
      %v442 = vpop.f32.mrb[0].mxu0
      %v443 = vadd.f32 %v216, %v442
      %v444 = vpop.f32.mrb[0].mxu0
      %445 = vmatprep.mubr.bf16.mxu0 0
      %446 = vmatmul.mubr.bf16.gmra.mrb[0].mxu0 %v329
      %v447 = vpop.f32.mrb[0].mxu0
      %v448 = vadd.f32 %v216, %v447
      %v449 = vpop.f32.mrb[0].mxu0
      %v450 = vpop.f32.mrb[0].mxu0
      %v451 = vadd.f32 %v216, %v450
      %v452 = vpop.f32.mrb[0].mxu0
      %453 = vmatprep.mubr.bf16.mxu0 0
      %454 = vmatmul.mubr.bf16.gmra.mrb[0].mxu0 %v332
      %v455 = vpop.f32.mrb[0].mxu0
      %v456 = vadd.f32 %v216, %v455
      %v457 = vpop.f32.mrb[0].mxu0
      %v458 = vpop.f32.mrb[0].mxu0
      %v459 = vadd.f32 %v216, %v458
      %v460 = vpop.f32.mrb[0].mxu0
      %461 = vmatprep.mubr.bf16.mxu0 0
      %462 = vmatmul.mubr.bf16.gmra.mrb[0].mxu0 %v335
      %v463 = vpop.f32.mrb[0].mxu0
      %v464 = vadd.f32 %v216, %v463
      %v465 = vpop.f32.mrb[0].mxu0
      %v466 = vpop.f32.mrb[0].mxu0
      %v467 = vadd.f32 %v216, %v466
      %v468 = vpop.f32.mrb[0].mxu0
      %469 = vmatprep.mubr.bf16.mxu0 0
      %470 = vmatmul.mubr.bf16.gmra.mrb[0].mxu0 %v338
      %v471 = vpop.f32.mrb[0].mxu0
      %v472 = vadd.f32 %v216, %v471
      %v473 = vpop.f32.mrb[0].mxu0
      %v474 = vpop.f32.mrb[0].mxu0
      %v475 = vadd.f32 %v216, %v474
      %v476 = vpop.f32.mrb[0].mxu0
      %477 = vmatprep.mubr.bf16.mxu0 0
      %478 = vmatmul.mubr.bf16.gmra.mrb[0].mxu0 %v341
      %v479 = vpop.f32.mrb[0].mxu0
      %v480 = vadd.f32 %v216, %v479
      %v481 = vpop.f32.mrb[0].mxu0
      %v482 = vpop.f32.mrb[0].mxu0
      %v483 = vadd.f32 %v216, %v482
      %v484 = vpop.f32.mrb[0].mxu0
      %485 = vmatprep.mubr.bf16.mxu0 0
      %486 = vmatmul.mubr.bf16.gmra.mrb[0].mxu0 %v344
      %v487 = vpop.f32.mrb[0].mxu0
      %v488 = vadd.f32 %v216, %v487
      %v489 = vpop.f32.mrb[0].mxu0
      %v490 = vpop.f32.mrb[0].mxu0
      %v491 = vadd.f32 %v216, %v490
      %v492 = vpop.f32.mrb[0].mxu0
      %493 = vmatprep.mubr.bf16.mxu0 0
      %494 = vmatmul.mubr.bf16.gmra.mrb[0].mxu0 %v347
      %v495 = vpop.f32.mrb[0].mxu0
      %v496 = vadd.f32 %v216, %v495
      %v497 = vpop.f32.mrb[0].mxu0
      %v498 = vpop.f32.mrb[0].mxu0
      %v499 = vadd.f32 %v216, %v498
      %v500 = vpop.f32.mrb[0].mxu0
      %501 = vmatprep.mubr.bf16.mxu0 0
      %502 = vmatmul.mubr.bf16.gmra.mrb[0].mxu0 %v350
      %v503 = vpop.f32.mrb[0].mxu0
      %v504 = vadd.f32 %v216, %v503
      %v505 = vpop.f32.mrb[0].mxu0
      %v506 = vpop.f32.mrb[0].mxu0
      %v507 = vadd.f32 %v216, %v506
      %v508 = vpop.f32.mrb[0].mxu0
      %509 = vmatprep.mubr.bf16.mxu0 0
      %510 = vmatmul.mubr.bf16.gmra.mrb[0].mxu0 %v353
      %v511 = vpop.f32.mrb[0].mxu0
      %v512 = vadd.f32 %v216, %v511
      %v513 = vpop.f32.mrb[0].mxu0
      %v514 = vpop.f32.mrb[0].mxu0
      %v515 = vadd.f32 %v216, %v514
      %v516 = vpop.f32.mrb[0].mxu0
      %517 = vmatprep.mubr.bf16.mxu0 0
      %518 = vmatmul.mubr.bf16.gmra.mrb[0].mxu0 %v356
      %v519 = vpop.f32.mrb[0].mxu0
      %v520 = vadd.f32 %v216, %v519
      %v521 = vpop.f32.mrb[0].mxu0
      %v522 = vpop.f32.mrb[0].mxu0
      %v523 = vadd.f32 %v216, %v522
      %v524 = vpop.f32.mrb[0].mxu0
      %525 = vdwg.mxu0
      %v526 = vmax.f32 %v400, 0.0
      %v527 = vmax.f32 %v403, 0.0
      %v528 = vmax.f32 %v408, 0.0
      %v529 = vmax.f32 %v411, 0.0
      %v530 = vmax.f32 %v416, 0.0
      %v531 = vmax.f32 %v419, 0.0
      %v532 = vmax.f32 %v424, 0.0
      %v533 = vmax.f32 %v427, 0.0
      %v534 = vmax.f32 %v432, 0.0
      %v535 = vmax.f32 %v435, 0.0
      %v536 = vmax.f32 %v440, 0.0
      %v537 = vmax.f32 %v443, 0.0
      %v538 = vmax.f32 %v448, 0.0
      %v539 = vmax.f32 %v451, 0.0
      %v540 = vmax.f32 %v456, 0.0
      %v541 = vmax.f32 %v459, 0.0
      %v542 = vmax.f32 %v464, 0.0
      %v543 = vmax.f32 %v467, 0.0
      %v544 = vmax.f32 %v472, 0.0
      %v545 = vmax.f32 %v475, 0.0
      %v546 = vmax.f32 %v480, 0.0
      %v547 = vmax.f32 %v483, 0.0
      %v548 = vmax.f32 %v488, 0.0
      %v549 = vmax.f32 %v491, 0.0
      %v550 = vmax.f32 %v496, 0.0
      %v551 = vmax.f32 %v499, 0.0
      %v552 = vmax.f32 %v504, 0.0
      %v553 = vmax.f32 %v507, 0.0
      %v554 = vmax.f32 %v512, 0.0
      %v555 = vmax.f32 %v515, 0.0
      %v556 = vmax.f32 %v520, 0.0
      %v557 = vmax.f32 %v523, 0.0
      %v558 = vmin.f32 %v526, 6.0
      %v559 = vmin.f32 %v527, 6.0
      %v560 = vmin.f32 %v528, 6.0
      %v561 = vmin.f32 %v529, 6.0
      %v562 = vmin.f32 %v530, 6.0
      %v563 = vmin.f32 %v531, 6.0
      %v564 = vmin.f32 %v532, 6.0
      %v565 = vmin.f32 %v533, 6.0
      %v566 = vmin.f32 %v534, 6.0
      %v567 = vmin.f32 %v535, 6.0
      %v568 = vmin.f32 %v536, 6.0
      %v569 = vmin.f32 %v537, 6.0
      %v570 = vmin.f32 %v538, 6.0
      %v571 = vmin.f32 %v539, 6.0
      %v572 = vmin.f32 %v540, 6.0
      %v573 = vmin.f32 %v541, 6.0
      %v574 = vmin.f32 %v542, 6.0
      %v575 = vmin.f32 %v543, 6.0
      %v576 = vmin.f32 %v544, 6.0
      %v577 = vmin.f32 %v545, 6.0
      %v578 = vmin.f32 %v546, 6.0
      %v579 = vmin.f32 %v547, 6.0
      %v580 = vmin.f32 %v548, 6.0
      %v581 = vmin.f32 %v549, 6.0
      %v582 = vmin.f32 %v550, 6.0
      %v583 = vmin.f32 %v551, 6.0
      %v584 = vmin.f32 %v552, 6.0
      %v585 = vmin.f32 %v553, 6.0
      %v586 = vmin.f32 %v554, 6.0
      %v587 = vmin.f32 %v555, 6.0
      %v588 = vmin.f32 %v556, 6.0
      %v589 = vmin.f32 %v557, 6.0
      %v590 = vpack.c.bf16 %v559, %v558
      %v591 = vpack.c.bf16 %v561, %v560
      %v592 = vpack.c.bf16 %v563, %v562
      %v593 = vpack.c.bf16 %v565, %v564
      %v594 = vpack.c.bf16 %v567, %v566
      %v595 = vpack.c.bf16 %v569, %v568
      %v596 = vpack.c.bf16 %v571, %v570
      %v597 = vpack.c.bf16 %v573, %v572
      %v598 = vpack.c.bf16 %v575, %v574
      %v599 = vpack.c.bf16 %v577, %v576
      %v600 = vpack.c.bf16 %v579, %v578
      %v601 = vpack.c.bf16 %v581, %v580
      %v602 = vpack.c.bf16 %v583, %v582
      %v603 = vpack.c.bf16 %v585, %v584
      %v604 = vpack.c.bf16 %v587, %v586
      %v605 = vpack.c.bf16 %v589, %v588
      %v622 = vunpack.c.l.b16 %v590
      %v623 = vunpack.c.h.b16 %v590
      %v624 = vunpack.c.l.b16 %v591
      %v625 = vunpack.c.h.b16 %v591
      %v626 = vunpack.c.l.b16 %v592
      %v627 = vunpack.c.h.b16 %v592
      %v628 = vunpack.c.l.b16 %v593
      %v629 = vunpack.c.h.b16 %v593
      %v630 = vunpack.c.l.b16 %v594
      %v631 = vunpack.c.h.b16 %v594
      %v632 = vunpack.c.l.b16 %v595
      %v633 = vunpack.c.h.b16 %v595
      %v634 = vunpack.c.l.b16 %v596
      %v635 = vunpack.c.h.b16 %v596
      %v636 = vunpack.c.l.b16 %v597
      %v637 = vunpack.c.h.b16 %v597
      %v638 = vunpack.c.l.b16 %v598
      %v639 = vunpack.c.h.b16 %v598
      %v640 = vunpack.c.l.b16 %v599
      %v641 = vunpack.c.h.b16 %v599
      %v642 = vunpack.c.l.b16 %v600
      %v643 = vunpack.c.h.b16 %v600
      %v644 = vunpack.c.l.b16 %v601
      %v645 = vunpack.c.h.b16 %v601
      %v646 = vunpack.c.l.b16 %v602
      %v647 = vunpack.c.h.b16 %v602
      %v648 = vunpack.c.l.b16 %v603
      %v649 = vunpack.c.h.b16 %v603
      %v650 = vunpack.c.l.b16 %v604
      %v651 = vunpack.c.h.b16 %v604
      %v652 = vunpack.c.l.b16 %v605
      %v653 = vunpack.c.h.b16 %v605
      %v654 = vpack.c.b16 %v622, %v622
      %v655 = vpack.c.b16 %v623, %v623
      %v656 = vpack.c.b16 %v624, %v624
      %v657 = vpack.c.b16 %v625, %v625
      %v658 = vpack.c.b16 %v626, %v626
      %v659 = vpack.c.b16 %v627, %v627
      %v660 = vpack.c.b16 %v628, %v628
      %v661 = vpack.c.b16 %v629, %v629
      %v662 = vpack.c.b16 %v630, %v630
      %v663 = vpack.c.b16 %v631, %v631
      %v664 = vpack.c.b16 %v632, %v632
      %v665 = vpack.c.b16 %v633, %v633
      %v666 = vpack.c.b16 %v634, %v634
      %v667 = vpack.c.b16 %v635, %v635
      %v668 = vpack.c.b16 %v636, %v636
      %v669 = vpack.c.b16 %v637, %v637
      %v670 = vpack.c.b16 %v638, %v638
      %v671 = vpack.c.b16 %v639, %v639
      %v672 = vpack.c.b16 %v640, %v640
      %v673 = vpack.c.b16 %v641, %v641
      %v674 = vpack.c.b16 %v642, %v642
      %v675 = vpack.c.b16 %v643, %v643
      %v676 = vpack.c.b16 %v644, %v644
      %v677 = vpack.c.b16 %v645, %v645
      %v678 = vpack.c.b16 %v646, %v646
      %v679 = vpack.c.b16 %v647, %v647
      %v680 = vpack.c.b16 %v648, %v648
      %v681 = vpack.c.b16 %v649, %v649
      %v682 = vpack.c.b16 %v650, %v650
      %v683 = vpack.c.b16 %v651, %v651
      %v684 = vpack.c.b16 %v652, %v652
      %v685 = vpack.c.b16 %v653, %v653
      %vm718 = vcmask 257024
      %719 = vst.msk [vmem:[%s172] sm:$0xf] %vm718, %v654
      %720 = vst.msk [vmem:[%s172 + $0x4] sm:$0xf] %vm718, %v655
      %721 = vst.msk [vmem:[%s172 + $0x8] sm:$0xf] %vm718, %v656
      %722 = vst.msk [vmem:[%s172 + $0xc] sm:$0xf] %vm718, %v657
      %723 = vst.msk [vmem:[%s172 + $0x10] sm:$0xf] %vm718, %v658
      %724 = vst.msk [vmem:[%s172 + $0x14] sm:$0xf] %vm718, %v659
      %725 = vst.msk [vmem:[%s172 + $0x18] sm:$0xf] %vm718, %v660
      %726 = vst.msk [vmem:[%s172 + $0x1c] sm:$0xf] %vm718, %v661
      %727 = vst.msk [vmem:[%s172 + $0x20] sm:$0xf] %vm718, %v662
      %728 = vst.msk [vmem:[%s172 + $0x24] sm:$0xf] %vm718, %v663
      %729 = vst.msk [vmem:[%s172 + $0x28] sm:$0xf] %vm718, %v664
      %730 = vst.msk [vmem:[%s172 + $0x2c] sm:$0xf] %vm718, %v665
      %731 = vst.msk [vmem:[%s172 + $0x30] sm:$0xf] %vm718, %v666
      %732 = vst.msk [vmem:[%s172 + $0x34] sm:$0xf] %vm718, %v667
      %733 = vst.msk [vmem:[%s172 + $0x38] sm:$0xf] %vm718, %v668
      %734 = vst.msk [vmem:[%s172 + $0x3c] sm:$0xf] %vm718, %v669
      %735 = vst.msk [vmem:[%s172 + $0x40] sm:$0xf] %vm718, %v670
      %736 = vst.msk [vmem:[%s172 + $0x44] sm:$0xf] %vm718, %v671
      %737 = vst.msk [vmem:[%s172 + $0x48] sm:$0xf] %vm718, %v672
      %738 = vst.msk [vmem:[%s172 + $0x4c] sm:$0xf] %vm718, %v673
      %739 = vst.msk [vmem:[%s172 + $0x50] sm:$0xf] %vm718, %v674
      %740 = vst.msk [vmem:[%s172 + $0x54] sm:$0xf] %vm718, %v675
      %741 = vst.msk [vmem:[%s172 + $0x58] sm:$0xf] %vm718, %v676
      %742 = vst.msk [vmem:[%s172 + $0x5c] sm:$0xf] %vm718, %v677
      %743 = vst.msk [vmem:[%s172 + $0x60] sm:$0xf] %vm718, %v678
      %744 = vst.msk [vmem:[%s172 + $0x64] sm:$0xf] %vm718, %v679
      %745 = vst.msk [vmem:[%s172 + $0x68] sm:$0xf] %vm718, %v680
      %746 = vst.msk [vmem:[%s172 + $0x6c] sm:$0xf] %vm718, %v681
      %747 = vst.msk [vmem:[%s172 + $0x70] sm:$0xf] %vm718, %v682
      %748 = vst.msk [vmem:[%s172 + $0x74] sm:$0xf] %vm718, %v683
      %749 = vst.msk [vmem:[%s172 + $0x78] sm:$0xf] %vm718, %v684
      %750 = vst.msk [vmem:[%s172 + $0x7c] sm:$0xf] %vm718, %v685
      %s751 = smul.u32 32, %s14
      %p752 = scmp.lt.s32.totalorder %s751, 63
      %s753 = scalar_select %p752, %s751, 63
      %s754 = smul.addr %s753, 4
      %s755 = scalar_lea.vmem %s3, %s754
      // Predicated region
      $region33: #{tpu_custom_call.1} parent=31 // pred_check
        %p756 = pneg %p100
      $region34: #{tpu_custom_call.1} parent=31 // pred_check_branch
        %758 = sbr.rel (%p756) target = $region36
      $region35: #{tpu_custom_call.1} parent=31 // pred_region
        %s759 = smul.u32 32, %s14
      $region36: #{tpu_custom_call.1} parent=31 // pred_fallthru
        _
    $region32: #{tpu_custom_call.1} parent=5 // pred_fallthru
      _
    %p760 = scmp.le.s32.totalorder 2, %s9
    // Predicated region
    $region37: #{tpu_custom_call.1} parent=5 // pred_check
      %p761 = pneg %p760
    $region38: #{tpu_custom_call.1} parent=5 // pred_check_branch
      %763 = sbr.rel (%p761) target = $region40
    $region39: #{tpu_custom_call.1} parent=5 // pred_region
      %s764 = ssub.s32 %s9, 2
      // Predicated region
      $region41: #{tpu_custom_call.1} parent=39 // pred_check
        %p765 = pneg %p106
      $region42: #{tpu_custom_call.1} parent=39 // pred_check_branch
        %767 = sbr.rel (%p765) target = $region44
      $region43: #{tpu_custom_call.1} parent=39 // pred_region
        %s768 = smul.u32 32, %s15
        %p769 = scmp.lt.s32.totalorder %s768, 63
        %s770 = scalar_select %p769, %s768, 63
        %s771 = smul.addr %s770, 4
        %s772 = scalar_lea.vmem %s3, %s771
      $region44: #{tpu_custom_call.1} parent=39 // pred_fallthru
        _
    $region40: #{tpu_custom_call.1} parent=5 // pred_fallthru
      _
  $region6: #{tpu_custom_call.1} parent=0 // loop_footer
    %s13 = sadd.s32 1, %s9
  $region7: #{tpu_custom_call.1} parent=0 // loop_footer_branch
    %8 = sbr.rel target = $region3
  $region8: #{tpu_custom_call.1} parent=0 // loop_exit
    _

</llo_original>
